<compile_context>
chip_gen: v7x
topology: tpu7x:2x2x1
jax: 0.10.0
libtpu: 0.0.40
codegen_flags: <defaults>
</compile_context>

<pallas_src>
import jax
import jax.numpy as jnp
from jax.experimental import pallas as pl
from jax.experimental.pallas import tpu as pltpu


def _cdiv(a, b):
    return (a + b - 1) // b


def _round_up(x, m):
    return _cdiv(x, m) * m


def _vmem_capacity_bytes():
    """Physical VMEM per TensorCore, with a v7x-safe fallback."""
    try:
        cap = getattr(pltpu.get_tpu_info(), "vmem_capacity_bytes", None)
        if cap:
            return int(cap)
    except Exception:
        pass
    return 64 * 1024 * 1024


def _make_fuse_kernel(num_inputs):
    def kernel(*refs):
        w_refs = refs[:num_inputs]                        # (Cout, Ci) bf16, perm+BN-scale folded
        bias_ref = refs[num_inputs]                       # (Cout, 1)  f32 folded BN bias
        x_refs = refs[num_inputs + 1:2 * num_inputs + 1]  # (Ci, T)    bf16 lane-dense tiles
        o_ref = refs[2 * num_inputs + 1]                  # (Cout, T)

        # 1x1 conv == channel-mixing matmul; accumulating the per-input pieces
        # here replaces the HBM concat. f32 accumulation on the MXU.
        y = jnp.dot(w_refs[0][...], x_refs[0][...],
                    preferred_element_type=jnp.float32)
        for i in range(1, num_inputs):
            y = y + jnp.dot(w_refs[i][...], x_refs[i][...],
                            preferred_element_type=jnp.float32)
        y = y + bias_ref[...]                             # folded BatchNorm bias
        # SiLU: exp and approx reciprocal both land on the EUP slot.
        sig = pl.reciprocal(1.0 + jnp.exp(-y), approx=True)
        o_ref[...] = (y * sig).astype(o_ref.dtype)

    return kernel


def fuse_forward(xs, weight, perm, bn_gamma, bn_beta, bn_mean, bn_var, *,
                 eps=1e-5, compute_dtype=jnp.bfloat16, out_dtype=None,
                 max_tile_hw=8192):
    """Pallas implementation of Fuse.forward for a list of NCHW tensors.

    xs:     list of (N, C_i, H, W) feature maps (channel-concatenated input).
    weight: (Cout, Cin) 1x1-conv weight (bias=False), Cin = sum(C_i).
    perm:   channel permutation (torch.randperm equivalent) applied to the
            concatenated input before the conv.
    bn_*:   eval-mode BatchNorm2d parameters / running statistics (per Cout).
    """
    # TODO(synk): training-mode BatchNorm (per-batch statistics) and the
    # never-invoked DropBlock member are not implemented; eval-mode running
    # stats are folded into the conv weight/bias below.
    num_inputs = len(xs)
    n, _, h, w = xs[0].shape
    cins = [int(x.shape[1]) for x in xs]
    cin_total = sum(cins)
    cout = int(weight.shape[0])
    assert weight.shape == (cout, cin_total)
    hw = h * w
    if out_dtype is None:
        out_dtype = compute_dtype

    # --- zero-cost parameter folding (wrapper side) -------------------------
    #   conv(W)(x[:, perm]) == conv(W[:, argsort(perm)])(x)
    #   BN scale gamma/sqrt(var+eps) folds into the weight rows; only the
    #   bias add remains in the kernel.
    s = (bn_gamma / jnp.sqrt(bn_var + eps)).astype(jnp.float32)
    w_eff = weight.astype(jnp.float32)[:, jnp.argsort(perm)] * s[:, None]
    bias = (bn_beta - bn_mean * s).reshape(cout, 1).astype(jnp.float32)

    # Column-split the folded weight at the input boundaries; reshape each
    # input (free, no HBM transpose) to (N, Ci, H*W); cast I/O to bf16.
    w_parts, x_parts, off = [], [], 0
    for x, ci in zip(xs, cins):
        w_parts.append(w_eff[:, off:off + ci].astype(compute_dtype))
        x_parts.append(x.reshape(n, ci, hw).astype(compute_dtype))
        off += ci

    # --- tile sizing from a generation-aware VMEM budget --------------------
    in_bytes = jnp.dtype(compute_dtype).itemsize
    out_bytes = jnp.dtype(out_dtype).itemsize
    vmem_cap = _vmem_capacity_bytes()               # 64 MiB v7x / 128 MiB v5e,v6e
    tile_budget = min(vmem_cap // 2, 64 * 1024 * 1024)
    param_bytes = cout * cin_total * in_bytes + cout * 4
    per_col = 2 * (cin_total * in_bytes + cout * out_bytes)   # double-buffered in+out
    tile_hw = max(128, min(max_tile_hw,
                           (tile_budget - param_bytes) // max(per_col, 1)))
    tile_hw = (tile_hw // 128) * 128
    if tile_hw >= hw:
        tile_hw = hw                                 # full axis: always a legal block
    # v7x has 2 TensorCores: make sure the "parallel" grid has >=2 programs.
    if n == 1 and tile_hw >= hw and hw > 256:
        tile_hw = _round_up(_cdiv(hw, 2), 128)
    grid = (n, _cdiv(hw, tile_hw))
    vmem_limit = min(int(vmem_cap * 3 // 4), 100 * 1024 * 1024)

    # --- BlockSpecs ----------------------------------------------------------
    in_specs = []
    for ci in cins:                                  # grid-invariant weight pieces
        in_specs.append(pl.BlockSpec((cout, ci), lambda b, t: (0, 0)))
    in_specs.append(pl.BlockSpec((cout, 1), lambda b, t: (0, 0)))   # BN bias
    for ci in cins:                                  # activation tiles (batch dim squeezed)
        in_specs.append(pl.BlockSpec((None, ci, tile_hw), lambda b, t: (b, 0, t)))
    out_spec = pl.BlockSpec((None, cout, tile_hw), lambda b, t: (b, 0, t))

    cost = pl.CostEstimate(
        flops=2 * cout * cin_total * n * hw,
        transcendentals=cout * n * hw,
        bytes_accessed=(cin_total * in_bytes + cout * out_bytes) * n * hw
        + param_bytes,
    )

    out3d = pl.pallas_call(
        _make_fuse_kernel(num_inputs),
        out_shape=jax.ShapeDtypeStruct((n, cout, hw), out_dtype),
        grid=grid,
        in_specs=in_specs,
        out_specs=out_spec,
        compiler_params=pltpu.CompilerParams(
            dimension_semantics=("parallel", "parallel"),
            vmem_limit_bytes=vmem_limit,
        ),
        cost_estimate=cost,
    )(*w_parts, bias, *x_parts)

    return out3d.reshape(n, cout, h, w)              # free reshape back to NCHW


if __name__ == "__main__":
    key = jax.random.PRNGKey(0)
    k_x0, k_x1, k_w, k_g, k_b, k_m, k_v, k_p = jax.random.split(key, 8)

    # Two 4-channel NCHW feature maps -> Fuse(in_channels=8, out_channels=8).
    n, c_each, hgt, wid = 2, 4, 16, 16
    x0 = jax.random.normal(k_x0, (n, c_each, hgt, wid), dtype=jnp.float32)
    x1 = jax.random.normal(k_x1, (n, c_each, hgt, wid), dtype=jnp.float32)
    cin = 2 * c_each
    cout = 8

    # 1x1 conv weight (Cout, Cin), no bias; eval-mode BatchNorm parameters.
    weight = 0.1 * jax.random.normal(k_w, (cout, cin), dtype=jnp.float32)
    gamma = 1.0 + 0.1 * jax.random.normal(k_g, (cout,), dtype=jnp.float32)
    beta = 0.1 * jax.random.normal(k_b, (cout,), dtype=jnp.float32)
    mean = 0.1 * jax.random.normal(k_m, (cout,), dtype=jnp.float32)
    var = jax.random.uniform(k_v, (cout,), dtype=jnp.float32, minval=0.5, maxval=1.5)
    eps = 1e-5
    # torch.randperm equivalent, made deterministic (callers regenerate per call
    # to reproduce training-time randomness).
    perm = jax.random.permutation(k_p, cin)

    out = fuse_forward([x0, x1], weight, perm, gamma, beta, mean, var, eps=eps)
    out = jax.block_until_ready(out)

    # Pure-JAX f32 reference (un-folded math).
    x_perm = jnp.concatenate([x0, x1], axis=1)[:, perm]
    y = jnp.einsum("oc,nchw->nohw", weight, x_perm,
                   precision=jax.lax.Precision.HIGHEST)
    s = gamma / jnp.sqrt(var + eps)
    b = beta - mean * s
    y = y * s[None, :, None, None] + b[None, :, None, None]
    ref = y * (1.0 / (1.0 + jnp.exp(-y)))

    assert out.shape == (n, cout, hgt, wid)
    out_f32 = out.astype(jnp.float32)
    err = float(jnp.max(jnp.abs(out_f32 - ref)))
    # Tolerance covers bf16 I/O + folded-weight rounding + approx reciprocal
    # versus the f32 / HIGHEST-precision reference.
    assert jnp.allclose(out_f32, ref, atol=4e-2, rtol=4e-2), err

    print("KERNEL_OK")
</pallas_src>

<mosaic_0001>
module attributes {stable_mosaic.version = 11 : i64} {
  func.func @kernel(%arg0: i32, %arg1: i32, %arg2: memref<8x4xbf16, #tpu.memory_space<vmem>>, %arg3: memref<8x4xbf16, #tpu.memory_space<vmem>>, %arg4: memref<8x1xf32, #tpu.memory_space<vmem>>, %arg5: memref<1x4x256xbf16, #tpu.memory_space<vmem>>, %arg6: memref<1x4x256xbf16, #tpu.memory_space<vmem>>, %arg7: memref<1x8x256xbf16, #tpu.memory_space<vmem>>) attributes {dimension_semantics = [#tpu.dimension_semantics<parallel>, #tpu.dimension_semantics<parallel>], iteration_bounds = array<i64: 2, 1>, scalar_prefetch = 0 : i64, scratch_operands = 0 : i64, tpu.core_type = #tpu.core_type<tc>, window_params = [{pipeline_mode = #tpu.pipeline_mode<synchronous>, transform_indices = @transform_0, window_bounds = array<i64: 8, 4>}, {pipeline_mode = #tpu.pipeline_mode<synchronous>, transform_indices = @transform_1, window_bounds = array<i64: 8, 4>}, {pipeline_mode = #tpu.pipeline_mode<synchronous>, transform_indices = @transform_2, window_bounds = array<i64: 8, 1>}, {transform_indices = @transform_3, window_bounds = array<i64: 1, 4, 256>}, {transform_indices = @transform_4, window_bounds = array<i64: 1, 4, 256>}, {transform_indices = @transform_5, window_bounds = array<i64: 1, 8, 256>}]} {
    %c0 = arith.constant 0 : index
    %c0_0 = arith.constant 0 : index
    %0 = vector.load %arg2[%c0, %c0_0] : memref<8x4xbf16, #tpu.memory_space<vmem>>, vector<8x4xbf16>
    %c0_1 = arith.constant 0 : index
    %c0_2 = arith.constant 0 : index
    %c0_3 = arith.constant 0 : index
    %1 = vector.load %arg5[%c0_1, %c0_2, %c0_3] : memref<1x4x256xbf16, #tpu.memory_space<vmem>>, vector<1x4x256xbf16>
    %2 = vector.shape_cast %1 : vector<1x4x256xbf16> to vector<4x256xbf16>
    %cst = arith.constant dense<0.000000e+00> : vector<8x256xf32>
    %3 = tpu.matmul %0, %2, %cst {dimension_numbers = #tpu.dot_dimension_numbers<[1], [0], [0], [1], [0, 0, 1, 1], [], []>} : vector<8x4xbf16>, vector<4x256xbf16>, vector<8x256xf32> -> vector<8x256xf32>
    %c0_4 = arith.constant 0 : index
    %c0_5 = arith.constant 0 : index
    %4 = vector.load %arg3[%c0_4, %c0_5] : memref<8x4xbf16, #tpu.memory_space<vmem>>, vector<8x4xbf16>
    %c0_6 = arith.constant 0 : index
    %c0_7 = arith.constant 0 : index
    %c0_8 = arith.constant 0 : index
    %5 = vector.load %arg6[%c0_6, %c0_7, %c0_8] : memref<1x4x256xbf16, #tpu.memory_space<vmem>>, vector<1x4x256xbf16>
    %6 = vector.shape_cast %5 : vector<1x4x256xbf16> to vector<4x256xbf16>
    %cst_9 = arith.constant dense<0.000000e+00> : vector<8x256xf32>
    %7 = tpu.matmul %4, %6, %cst_9 {dimension_numbers = #tpu.dot_dimension_numbers<[1], [0], [0], [1], [0, 0, 1, 1], [], []>} : vector<8x4xbf16>, vector<4x256xbf16>, vector<8x256xf32> -> vector<8x256xf32>
    %8 = arith.addf %3, %7 : vector<8x256xf32>
    %c0_10 = arith.constant 0 : index
    %c0_11 = arith.constant 0 : index
    %9 = vector.load %arg4[%c0_10, %c0_11] : memref<8x1xf32, #tpu.memory_space<vmem>>, vector<8x1xf32>
    %10 = vector.broadcast %9 : vector<8x1xf32> to vector<8x256xf32>
    %11 = arith.addf %8, %10 : vector<8x256xf32>
    %cst_12 = arith.constant 0.000000e+00 : f32
    %12 = vector.broadcast %cst_12 : f32 to vector<8x256xf32>
    %13 = arith.subf %12, %11 : vector<8x256xf32>
    %14 = math.exp %13 : vector<8x256xf32>
    %cst_13 = arith.constant 1.000000e+00 : f32
    %15 = vector.broadcast %cst_13 : f32 to vector<8x256xf32>
    %16 = arith.addf %15, %14 : vector<8x256xf32>
    %17 = tpu.reciprocal %16 {approx = true} : vector<8x256xf32> -> vector<8x256xf32>
    %18 = arith.mulf %11, %17 : vector<8x256xf32>
    %19 = arith.truncf %18 : vector<8x256xf32> to vector<8x256xbf16>
    %c0_14 = arith.constant 0 : index
    %c0_15 = arith.constant 0 : index
    %c0_16 = arith.constant 0 : index
    %20 = vector.load %arg7[%c0_14, %c0_15, %c0_16] : memref<1x8x256xbf16, #tpu.memory_space<vmem>>, vector<1x8x256xbf16>
    %21 = vector.shape_cast %20 : vector<1x8x256xbf16> to vector<8x256xbf16>
    %22 = vector.shape_cast %19 : vector<8x256xbf16> to vector<1x8x256xbf16>
    tpu.vector_store %arg7[%c0_14, %c0_15, %c0_16], %22 {strides = array<i32>} : memref<1x8x256xbf16, #tpu.memory_space<vmem>>, vector<1x8x256xbf16>,
    return
  }
  func.func @transform_0(%arg0: i32, %arg1: i32) -> (i32, i32) {
    %c0_i32 = arith.constant 0 : i32
    %c0_i32_0 = arith.constant 0 : i32
    %c0_i32_1 = arith.constant 0 : i32
    return %c0_i32, %c0_i32_0 : i32, i32
  }
  func.func @transform_1(%arg0: i32, %arg1: i32) -> (i32, i32) {
    %c0_i32 = arith.constant 0 : i32
    %c0_i32_0 = arith.constant 0 : i32
    %c0_i32_1 = arith.constant 0 : i32
    return %c0_i32, %c0_i32_0 : i32, i32
  }
  func.func @transform_2(%arg0: i32, %arg1: i32) -> (i32, i32) {
    %c0_i32 = arith.constant 0 : i32
    %c0_i32_0 = arith.constant 0 : i32
    %c0_i32_1 = arith.constant 0 : i32
    return %c0_i32, %c0_i32_0 : i32, i32
  }
  func.func @transform_3(%arg0: i32, %arg1: i32) -> (i32, i32, i32) {
    %c0_i32 = arith.constant 0 : i32
    %c0_i32_0 = arith.constant 0 : i32
    return %arg0, %c0_i32, %arg1 : i32, i32, i32
  }
  func.func @transform_4(%arg0: i32, %arg1: i32) -> (i32, i32, i32) {
    %c0_i32 = arith.constant 0 : i32
    %c0_i32_0 = arith.constant 0 : i32
    return %arg0, %c0_i32, %arg1 : i32, i32, i32
  }
  func.func @transform_5(%arg0: i32, %arg1: i32) -> (i32, i32, i32) {
    %c0_i32 = arith.constant 0 : i32
    %c0_i32_0 = arith.constant 0 : i32
    return %arg0, %c0_i32, %arg1 : i32, i32, i32
  }
}

</mosaic_0001>

<llo_original>
// kernel: tpu_custom_call.1
$region0: #{tpu_custom_call.1}
  #allocation0 [shape = 'u32[]', space=smem, size = 0x4, offset = 0x4, fixed_abs, tag = 'smem constant byte address 0x4 - core index']
  #allocation1 [shape = 'u32[144,128]{1,0:T(1,128)}', space=vmem, size = 0x12000, scoped, tag = 'internal scratch']
  %s0 = inlined_call_operand.vmem [shape: bf16[8,4], index: 0, kind: input, shape index: {}]
  %s1 = inlined_call_operand.vmem [shape: bf16[8,4], index: 1, kind: input, shape index: {}]
  %s2 = inlined_call_operand.vmem [shape: f32[8,1], index: 2, kind: input, shape index: {}]
  %s3 = inlined_call_operand.vmem [shape: bf16[2,4,256], index: 3, kind: input, shape index: {}]
  %s4 = inlined_call_operand.vmem [shape: bf16[2,4,256], index: 4, kind: input, shape index: {}]
  %s5 = inlined_call_operand.hbm [shape: bf16[2,8,256], index: 5, kind: output, shape index: {}]
  %s6 = sld [smem:[#allocation0]]
  $region53: #{tpu_custom_call.1} parent=0
    _
  %s8 = ssub.s32 1, %s6
  %s9 = scalar_select 0, %s8, %s6
  $region1: #{tpu_custom_call.1} parent=0
    #allocation2 [shape = 'u8[8192]{0}', space=vmem, size = 0x2000, scoped, tag = 'output window, operand 0']
    #allocation3 [shape = 's32[2]{0}', space=sflag, size = 0x8, scoped, tag = 'scoped memory for tpu_custom_call.1']
    %10 = vsyncpa [#allocation3], 0
    %s11 = scalar_lea.sflag [#allocation3], 1
    %12 = vsyncpa %s11, 0
    loop: start=0, step=1, limit=4
    $region2: #{tpu_custom_call.1} parent=1 // loop_pre_header
      _
    $region3: #{tpu_custom_call.1} parent=1 // loop_header
      %s14 = sphi 0, %s18
      %p15 = scmp.ge.s32.totalorder %s14, 4
      %s21 = sphi 0, %s33
      %s22 = sphi 0, %s29
      %s23 = sphi 0, %s21
      %s24 = sphi 0, %s22
      %s25 = sphi 0, %s23
      %s26 = sphi 0, %s24
      %s34 = sphi 0, %s34
      %s36 = sphi 0, %s34
      %s37 = sphi 0, %s36
      %s51 = sphi 0, %s37
      %s55 = sphi 0, %s55
      %s57 = sphi 0, %s55
      %s58 = sphi 0, %s57
      %s72 = sphi 0, %s58
      %s76 = sphi 0, %s76
      %s78 = sphi 0, %s76
      %s79 = sphi 0, %s78
      %s93 = sphi 0, %s79
      %s101 = sphi 0, %s103
      %s104 = sphi 0, %s101
      %s105 = sphi 0, %s104
      %s121 = sphi 0, %s105
      %s129 = sphi 0, %s131
      %s132 = sphi 0, %s129
      %s133 = sphi 0, %s132
      %s149 = sphi 0, %s133
      %s157 = sphi 0, %s159
      %s160 = sphi 0, %s157
      %s161 = sphi 0, %s160
      %s177 = sphi 0, %s161
    $region4: #{tpu_custom_call.1} parent=1 // loop_header_branch
      %17 = sbr.rel (%p15) target = $region8
    $region5: #{tpu_custom_call.1} parent=1 // loop_body
      %s19 = ssub.s32 %s14, 1
      %s20 = ssub.s32 %s14, 2
      %s27 = sadd.s32 1, %s22
      %p28 = scmp.ge.s32.totalorder %s27, 1
      %s29 = scalar_select %p28, 0, %s27
      %s30 = sadd.s32 1, %s21
      %s31 = scalar_select %p28, %s30, %s21
      %p32 = scmp.ge.s32.totalorder %s31, 2
      %s33 = scalar_select %p32, 0, %s31
      %s35 = sadd.s32 %s34, 1
      %p38 = scmp.eq.s32.totalorder %s14, 1
      %p39 = scmp.ne.s32.totalorder %s34, %s36
      %p40 = scmp.eq.s32.totalorder %s14, 0
      %p41 = por %p39, %p40
      %p42 = scmp.ne.s32.totalorder %s34, %s36
      %p43 = scmp.eq.s32.totalorder %s19, 1
      %p44 = por %p42, %p43
      %p45 = scmp.ne.s32.totalorder %s36, %s37
      %p46 = scmp.eq.s32.totalorder %s19, 0
      %p47 = por %p45, %p46
      %p48 = scmp.ne.s32.totalorder %s36, %s37
      %p49 = scmp.eq.s32.totalorder %s20, 1
      %p50 = por %p48, %p49
      %p52 = scmp.ne.s32.totalorder %s37, %s51
      %p53 = scmp.eq.s32.totalorder %s20, 0
      %p54 = por %p52, %p53
      %s56 = sadd.s32 %s55, 1
      %p59 = scmp.eq.s32.totalorder %s14, 1
      %p60 = scmp.ne.s32.totalorder %s55, %s57
      %p61 = scmp.eq.s32.totalorder %s14, 0
      %p62 = por %p60, %p61
      %p63 = scmp.ne.s32.totalorder %s55, %s57
      %p64 = scmp.eq.s32.totalorder %s19, 1
      %p65 = por %p63, %p64
      %p66 = scmp.ne.s32.totalorder %s57, %s58
      %p67 = scmp.eq.s32.totalorder %s19, 0
      %p68 = por %p66, %p67
      %p69 = scmp.ne.s32.totalorder %s57, %s58
      %p70 = scmp.eq.s32.totalorder %s20, 1
      %p71 = por %p69, %p70
      %p73 = scmp.ne.s32.totalorder %s58, %s72
      %p74 = scmp.eq.s32.totalorder %s20, 0
      %p75 = por %p73, %p74
      %s77 = sadd.s32 %s76, 1
      %p80 = scmp.eq.s32.totalorder %s14, 1
      %p81 = scmp.ne.s32.totalorder %s76, %s78
      %p82 = scmp.eq.s32.totalorder %s14, 0
      %p83 = por %p81, %p82
      %p84 = scmp.ne.s32.totalorder %s76, %s78
      %p85 = scmp.eq.s32.totalorder %s19, 1
      %p86 = por %p84, %p85
      %p87 = scmp.ne.s32.totalorder %s78, %s79
      %p88 = scmp.eq.s32.totalorder %s19, 0
      %p89 = por %p87, %p88
      %p90 = scmp.ne.s32.totalorder %s78, %s79
      %p91 = scmp.eq.s32.totalorder %s20, 1
      %p92 = por %p90, %p91
      %p94 = scmp.ne.s32.totalorder %s79, %s93
      %p95 = scmp.eq.s32.totalorder %s20, 0
      %p96 = por %p94, %p95
      %s97 = ssub.s32 %s21, %s33
      %s98 = ssub.s32 %s22, %s29
      %s99 = sor.u32 %s97, %s98
      %p100 = scmp.eq.s32.totalorder %s99, 0
      %s102 = sadd.s32 %s101, 1
      %s103 = scalar_select %p100, %s101, %s102
      %p106 = pneg %p100
      %p107 = scmp.eq.s32.totalorder %s14, 1
      %p108 = por %p106, %p107
      %p109 = scmp.ne.s32.totalorder %s101, %s104
      %p110 = scmp.eq.s32.totalorder %s14, 0
      %p111 = por %p109, %p110
      %p112 = scmp.ne.s32.totalorder %s101, %s104
      %p113 = scmp.eq.s32.totalorder %s19, 1
      %p114 = por %p112, %p113
      %p115 = scmp.ne.s32.totalorder %s104, %s105
      %p116 = scmp.eq.s32.totalorder %s19, 0
      %p117 = por %p115, %p116
      %p118 = scmp.ne.s32.totalorder %s104, %s105
      %p119 = scmp.eq.s32.totalorder %s20, 1
      %p120 = por %p118, %p119
      %p122 = scmp.ne.s32.totalorder %s105, %s121
      %p123 = scmp.eq.s32.totalorder %s20, 0
      %p124 = por %p122, %p123
      %s125 = ssub.s32 %s21, %s33
      %s126 = ssub.s32 %s22, %s29
      %s127 = sor.u32 %s125, %s126
      %p128 = scmp.eq.s32.totalorder %s127, 0
      %s130 = sadd.s32 %s129, 1
      %s131 = scalar_select %p128, %s129, %s130
      %p134 = pneg %p128
      %p135 = scmp.eq.s32.totalorder %s14, 1
      %p136 = por %p134, %p135
      %p137 = scmp.ne.s32.totalorder %s129, %s132
      %p138 = scmp.eq.s32.totalorder %s14, 0
      %p139 = por %p137, %p138
      %p140 = scmp.ne.s32.totalorder %s129, %s132
      %p141 = scmp.eq.s32.totalorder %s19, 1
      %p142 = por %p140, %p141
      %p143 = scmp.ne.s32.totalorder %s132, %s133
      %p144 = scmp.eq.s32.totalorder %s19, 0
      %p145 = por %p143, %p144
      %p146 = scmp.ne.s32.totalorder %s132, %s133
      %p147 = scmp.eq.s32.totalorder %s20, 1
      %p148 = por %p146, %p147
      %p150 = scmp.ne.s32.totalorder %s133, %s149
      %p151 = scmp.eq.s32.totalorder %s20, 0
      %p152 = por %p150, %p151
      %s153 = ssub.s32 %s21, %s33
      %s154 = ssub.s32 %s22, %s29
      %s155 = sor.u32 %s153, %s154
      %p156 = scmp.eq.s32.totalorder %s155, 0
      %s158 = sadd.s32 %s157, 1
      %s159 = scalar_select %p156, %s157, %s158
      %p162 = pneg %p156
      %p163 = scmp.eq.s32.totalorder %s14, 1
      %p164 = por %p162, %p163
      %p165 = scmp.ne.s32.totalorder %s157, %s160
      %p166 = scmp.eq.s32.totalorder %s14, 0
      %p167 = por %p165, %p166
      %p168 = scmp.ne.s32.totalorder %s157, %s160
      %p169 = scmp.eq.s32.totalorder %s19, 1
      %p170 = por %p168, %p169
      %p171 = scmp.ne.s32.totalorder %s160, %s161
      %p172 = scmp.eq.s32.totalorder %s19, 0
      %p173 = por %p171, %p172
      %p174 = scmp.ne.s32.totalorder %s160, %s161
      %p175 = scmp.eq.s32.totalorder %s20, 1
      %p176 = por %p174, %p175
      %p178 = scmp.ne.s32.totalorder %s161, %s177
      %p179 = scmp.eq.s32.totalorder %s20, 0
      %p180 = por %p178, %p179
      %p181 = scmp.le.s32.totalorder 1, %s14
      %p182 = scmp.lt.s32.totalorder %s14, 3
      %p183 = pnand %p181, %p182
      %p184 = pneg %p183
      // Predicated region
      $region9: #{tpu_custom_call.1} parent=5 // pred_check
        _
      $region10: #{tpu_custom_call.1} parent=5 // pred_check_branch
        %186 = sbr.rel (%p183) target = $region12
      $region11: #{tpu_custom_call.1} parent=5 // pred_region
        %s187 = ssub.s32 %s14, 1
        // Predicated region
        $region13: #{tpu_custom_call.1} parent=11 // pred_check
          %p188 = pneg %p47
        $region14: #{tpu_custom_call.1} parent=11 // pred_check_branch
          %190 = sbr.rel (%p188) target = $region16
        $region15: #{tpu_custom_call.1} parent=11 // pred_region
          _
        $region16: #{tpu_custom_call.1} parent=11 // pred_fallthru
          _
        // Predicated region
        $region17: #{tpu_custom_call.1} parent=11 // pred_check
          %p191 = pneg %p68
        $region18: #{tpu_custom_call.1} parent=11 // pred_check_branch
          %193 = sbr.rel (%p191) target = $region20
        $region19: #{tpu_custom_call.1} parent=11 // pred_region
          _
        $region20: #{tpu_custom_call.1} parent=11 // pred_fallthru
          _
        // Predicated region
        $region21: #{tpu_custom_call.1} parent=11 // pred_check
          %p194 = pneg %p89
        $region22: #{tpu_custom_call.1} parent=11 // pred_check_branch
          %196 = sbr.rel (%p194) target = $region24
        $region23: #{tpu_custom_call.1} parent=11 // pred_region
          _
        $region24: #{tpu_custom_call.1} parent=11 // pred_fallthru
          _
      $region12: #{tpu_custom_call.1} parent=5 // pred_fallthru
        _
      %p197 = scmp.lt.s32.totalorder %s14, 2
      // Predicated region
      $region25: #{tpu_custom_call.1} parent=5 // pred_check
        %p198 = pneg %p197
      $region26: #{tpu_custom_call.1} parent=5 // pred_check_branch
        %200 = sbr.rel (%p198) target = $region28
      $region27: #{tpu_custom_call.1} parent=5 // pred_region
        // Predicated region
        $region29: #{tpu_custom_call.1} parent=27 // pred_check
          %p201 = pneg %p111
        $region30: #{tpu_custom_call.1} parent=27 // pred_check_branch
          %203 = sbr.rel (%p201) target = $region32
        $region31: #{tpu_custom_call.1} parent=27 // pred_region
          %s204 = smul.u32 2, %s22
          %p205 = scmp.lt.s32.totalorder %s21, 1
          %s206 = scalar_select %p205, %s21, 1
          %p207 = scmp.lt.s32.totalorder %s204, 1
          %s208 = scalar_select %p207, %s204, 1
          %s209 = smul.addr %s206, 2
          %s210 = sadd.s32 %s208, %s209
          %s211 = smul.addr %s210, 2
          %s212 = scalar_lea.vmem %s3, %s211
          %s213 = smul.u32 2, %s22
        $region32: #{tpu_custom_call.1} parent=27 // pred_fallthru
          _
        // Predicated region
        $region33: #{tpu_custom_call.1} parent=27 // pred_check
          %p214 = pneg %p139
        $region34: #{tpu_custom_call.1} parent=27 // pred_check_branch
          %216 = sbr.rel (%p214) target = $region36
        $region35: #{tpu_custom_call.1} parent=27 // pred_region
          %s217 = smul.u32 2, %s22
          %p218 = scmp.lt.s32.totalorder %s21, 1
          %s219 = scalar_select %p218, %s21, 1
          %p220 = scmp.lt.s32.totalorder %s217, 1
          %s221 = scalar_select %p220, %s217, 1
          %s222 = smul.addr %s219, 2
          %s223 = sadd.s32 %s221, %s222
          %s224 = smul.addr %s223, 2
          %s225 = scalar_lea.vmem %s4, %s224
          %s226 = smul.u32 2, %s22
        $region36: #{tpu_custom_call.1} parent=27 // pred_fallthru
          _
      $region28: #{tpu_custom_call.1} parent=5 // pred_fallthru
        _
      %p227 = scmp.le.s32.totalorder 1, %s14
      %p228 = scmp.lt.s32.totalorder %s14, 3
      %p229 = pnand %p227, %p228
      %p230 = pneg %p229
      // Predicated region
      $region37: #{tpu_custom_call.1} parent=5 // pred_check
        _
      $region38: #{tpu_custom_call.1} parent=5 // pred_check_branch
        %232 = sbr.rel (%p229) target = $region40
      $region39: #{tpu_custom_call.1} parent=5 // pred_region
        %s233 = ssub.s32 %s14, 1
        %p234 = pneg %p47
        %p235 = pneg %p44
        %p236 = pneg %p68
        %p237 = pneg %p65
        %p238 = pneg %p89
        %p239 = pneg %p86
        %s240 = smul.u32 2, %s24
        %p241 = scmp.lt.s32.totalorder %s23, 1
        %s242 = scalar_select %p241, %s23, 1
        %p243 = scmp.lt.s32.totalorder %s240, 1
        %s244 = scalar_select %p243, %s240, 1
        %s245 = smul.addr %s242, 2
        %s246 = sadd.s32 %s244, %s245
        %s247 = smul.addr %s246, 2
        %s248 = scalar_lea.vmem %s3, %s247
        %p249 = pneg %p117
        %p250 = pneg %p114
        %s251 = smul.u32 2, %s24
        %p252 = scmp.lt.s32.totalorder %s23, 1
        %s253 = scalar_select %p252, %s23, 1
        %p254 = scmp.lt.s32.totalorder %s251, 1
        %s255 = scalar_select %p254, %s251, 1
        %s256 = smul.addr %s253, 2
        %s257 = sadd.s32 %s255, %s256
        %s258 = smul.addr %s257, 2
        %s259 = scalar_lea.vmem %s4, %s258
        %p260 = pneg %p145
        %p261 = pneg %p142
        %p262 = pneg %p173
        %p263 = pneg %p170
        %s264 = sand.u32 %s160, 1
        %s265 = scalar_lea.sflag [#allocation3], %s264
        %s266 = sand.u32 %s160, 1
        %s267 = smul.addr %s266, 8
        %s268 = scalar_lea.vmem [#allocation2], %s267
        %s269 = smul.u32 2, %s24
        %p270 = scmp.lt.s32.totalorder %s23, 1
        %s271 = scalar_select %p270, %s23, 1
        %p272 = scmp.lt.s32.totalorder %s269, 1
        %s273 = scalar_select %p272, %s269, 1
        %s274 = smul.addr %s271, 2
        %s275 = sadd.s32 %s273, %s274
        %s276 = smul.addr %s275, 2
        %s277 = scalar_lea.vmem %s3, %s276
        %s278 = smul.u32 2, %s24
        %s279 = smul.u32 2, %s24
        %p280 = scmp.lt.s32.totalorder %s23, 1
        %s281 = scalar_select %p280, %s23, 1
        %p282 = scmp.lt.s32.totalorder %s279, 1
        %s283 = scalar_select %p282, %s279, 1
        %s284 = smul.addr %s281, 2
        %s285 = sadd.s32 %s283, %s284
        %s286 = smul.addr %s285, 2
        %s287 = scalar_lea.vmem %s4, %s286
        %s288 = smul.u32 2, %s24
        %s289 = smul.u32 2, %s24
        %v291 = vld [vmem:[%s0] sm:$0xf]
        %v292 = vld [vmem:[%s277] sm:$0xf]
        %v293 = vld [vmem:[%s1] sm:$0xf]
        %v294 = vld [vmem:[%s287] sm:$0xf]
        %v297 = vunpack.c.l.s4 1983009808
        %v298 = vunpack.c.0.s8 %v297
        %v299 = vlaneseq
        %v300 = vshrl.u32 %v299, 7
        %v301 = vsub.s32 %v298, %v300
        %v302 = vrot.slane %v294, %v301
        %v303 = vcombine.high %v302, %v302
        %vm304 = vcmask 31744
        %v306 = vsel %vm304, %v293, 0
        %vm308 = vcmask 1041408
        %v310 = vsel %vm308, %v302, 0
        %v313 = vsel %vm308, %v303, 0
        %315 = vmatprep.subr.bf16.mxu0 %v313
        %316 = vmatpush1.bf16.msra.mxu0 %v310
        %317 = vmatprep.subr.bf16.mxu0 0
        %318 = vmatpush1.bf16.msra.mxu0 0
        %319 = vmatprep.subr.bf16.mxu0 0
        %320 = vmatpush1.bf16.msra.mxu0 0
        %321 = vmatprep.subr.bf16.mxu0 0
        %322 = vmatpush1.bf16.msra.mxu0 0
        %323 = vmatprep.subr.bf16.mxu0 0
        %324 = vmatpush1.bf16.msra.mxu0 0
        %325 = vmatprep.subr.bf16.mxu0 0
        %326 = vmatpush1.bf16.msra.mxu0 0
        %327 = vmatprep.subr.bf16.mxu0 0
        %328 = vmatpush1.bf16.msra.mxu0 0
        %329 = vmatprep.subr.bf16.mxu0 0
        %330 = vmatpush1.bf16.msra.mxu0 0
        %331 = vmatprep.subr.bf16.mxu0 0
        %332 = vmatpush1.bf16.msra.mxu0 0
        %333 = vmatprep.subr.bf16.mxu0 0
        %334 = vmatpush1.bf16.msra.mxu0 0
        %335 = vmatprep.subr.bf16.mxu0 0
        %336 = vmatpush1.bf16.msra.mxu0 0
        %337 = vmatprep.subr.bf16.mxu0 0
        %338 = vmatpush1.bf16.msra.mxu0 0
        %339 = vmatprep.subr.bf16.mxu0 0
        %340 = vmatpush1.bf16.msra.mxu0 0
        %341 = vmatprep.subr.bf16.mxu0 0
        %342 = vmatpush1.bf16.msra.mxu0 0
        %343 = vmatprep.subr.bf16.mxu0 0
        %344 = vmatpush1.bf16.msra.mxu0 0
        %345 = vmatprep.subr.bf16.mxu0 0
        %346 = vmatpush1.bf16.msra.mxu0 0
        %347 = vmatprep.mubr.bf16.mxu0 0
        %348 = vmatmul.mubr.bf16.gmra.mrb[0].mxu0 %v306
        %v349 = vpop.f32.mrb[0].mxu0
        %v350 = vadd.f32 0.0, %v349
        %v351 = vpop.f32.mrb[0].mxu0
        %v352 = vadd.f32 0.0, %v351
        %v353 = vpop.f32.mrb[0].mxu0
        %v354 = vpop.f32.mrb[0].mxu0
        %355 = vdwg.mxu0
        %v358 = vunpack.c.l.s4 1983009808
        %v359 = vunpack.c.0.s8 %v358
        %v360 = vlaneseq
        %v361 = vshrl.u32 %v360, 7
        %v362 = vsub.s32 %v359, %v361
        %v363 = vrot.slane %v292, %v362
        %v364 = vcombine.high %v363, %v363
        %v366 = vsel %vm304, %v291, 0
        %v369 = vsel %vm308, %v363, 0
        %v372 = vsel %vm308, %v364, 0
        %374 = vmatprep.subr.bf16.mxu0 %v372
        %375 = vmatpush1.bf16.msra.mxu0 %v369
        %376 = vmatprep.subr.bf16.mxu0 0
        %377 = vmatpush1.bf16.msra.mxu0 0
        %378 = vmatprep.subr.bf16.mxu0 0
        %379 = vmatpush1.bf16.msra.mxu0 0
        %380 = vmatprep.subr.bf16.mxu0 0
        %381 = vmatpush1.bf16.msra.mxu0 0
        %382 = vmatprep.subr.bf16.mxu0 0
        %383 = vmatpush1.bf16.msra.mxu0 0
        %384 = vmatprep.subr.bf16.mxu0 0
        %385 = vmatpush1.bf16.msra.mxu0 0
        %386 = vmatprep.subr.bf16.mxu0 0
        %387 = vmatpush1.bf16.msra.mxu0 0
        %388 = vmatprep.subr.bf16.mxu0 0
        %389 = vmatpush1.bf16.msra.mxu0 0
        %390 = vmatprep.subr.bf16.mxu0 0
        %391 = vmatpush1.bf16.msra.mxu0 0
        %392 = vmatprep.subr.bf16.mxu0 0
        %393 = vmatpush1.bf16.msra.mxu0 0
        %394 = vmatprep.subr.bf16.mxu0 0
        %395 = vmatpush1.bf16.msra.mxu0 0
        %396 = vmatprep.subr.bf16.mxu0 0
        %397 = vmatpush1.bf16.msra.mxu0 0
        %398 = vmatprep.subr.bf16.mxu0 0
        %399 = vmatpush1.bf16.msra.mxu0 0
        %400 = vmatprep.subr.bf16.mxu0 0
        %401 = vmatpush1.bf16.msra.mxu0 0
        %402 = vmatprep.subr.bf16.mxu0 0
        %403 = vmatpush1.bf16.msra.mxu0 0
        %404 = vmatprep.subr.bf16.mxu0 0
        %405 = vmatpush1.bf16.msra.mxu0 0
        %406 = vmatprep.mubr.bf16.mxu0 0
        %407 = vmatmul.mubr.bf16.gmra.mrb[0].mxu0 %v366
        %v408 = vpop.f32.mrb[0].mxu0
        %v409 = vadd.f32 %v350, %v408
        %v410 = vpop.f32.mrb[0].mxu0
        %v411 = vadd.f32 %v352, %v410
        %v412 = vpop.f32.mrb[0].mxu0
        %v413 = vpop.f32.mrb[0].mxu0
        %414 = vdwg.mxu0
        %v415 = vld [vmem:[%s2] sm:$0xff]
        %417 = vset.pattern.permute.xlu0 0
        %418 = vperm.xlu0 %417, %v415
        %v419 = vpop.permute.xlu0 %418
        %v421 = vadd.f32 %v409, %v419
        %v422 = vadd.f32 %v411, %v419
        %v423 = vsub.f32 0.0, %v421
        %v424 = vsub.f32 0.0, %v422
        %v425 = vmul.f32 %v423, 1.442695
        %v426 = vpow.pop %v425
        %v427 = vmul.f32 %v424, 1.442695
        %v428 = vpow.pop %v427
        %v429 = vadd.f32 %v426, 1.0
        %v430 = vadd.f32 %v428, 1.0
        %v431 = vrcp.pop %v429
        %v432 = vrcp.pop %v430
        %v433 = vmul.f32 %v421, %v431
        %v434 = vmul.f32 %v422, %v432
        %v435 = vpack.c.bf16 %v433, %v433
        %v436 = vpack.c.bf16 %v434, %v434
        %v439 = vunpack.c.l.b16 %v435
        %v440 = vunpack.c.l.b16 %v436
        %v441 = vpack.c.b16 %v440, %v439
        %443 = vst [vmem:[%s268] sm:$0xff] %v441
        %s444 = sand.u32 %s160, 1
        %s445 = scalar_lea.sflag [#allocation3], %s444
        %s446 = sand.u32 %s160, 1
        %s447 = smul.addr %s446, 8
        %s448 = scalar_lea.vmem [#allocation2], %s447
        // Predicated region
        $region41: #{tpu_custom_call.1} parent=39 // pred_check
          %p449 = pneg %p170
        $region42: #{tpu_custom_call.1} parent=39 // pred_check_branch
          %451 = sbr.rel (%p449) target = $region44
        $region43: #{tpu_custom_call.1} parent=39 // pred_region
          %s452 = smul.u32 2, %s24
          %s454 = ssub.s32 128, 128
          %455 = vsyncadd %s445, %s454
          %s456 = smul.addr %s23, 2
          %s457 = sadd.s32 %s452, %s456
          %s458 = smul.addr %s457, 64
          %s459 = scalar_lea.hbm %s5, %s458
          %s461 = sshll.u32 %s448, 4
          %s462 = int_to_ptr.vmem [resolvable:$true] %s461
          %464 = dma.vmem_to_hbm [thread:$0]  %s462, 128, %s459, %s445
        $region44: #{tpu_custom_call.1} parent=39 // pred_fallthru
          _
      $region40: #{tpu_custom_call.1} parent=5 // pred_fallthru
        _
      %p465 = scmp.le.s32.totalorder 2, %s14
      // Predicated region
      $region45: #{tpu_custom_call.1} parent=5 // pred_check
        %p466 = pneg %p465
      $region46: #{tpu_custom_call.1} parent=5 // pred_check_branch
        %468 = sbr.rel (%p466) target = $region48
      $region47: #{tpu_custom_call.1} parent=5 // pred_region
        %s469 = ssub.s32 %s14, 2
        // Predicated region
        $region49: #{tpu_custom_call.1} parent=47 // pred_check
          %p470 = pneg %p176
        $region50: #{tpu_custom_call.1} parent=47 // pred_check_branch
          %472 = sbr.rel (%p470) target = $region52
        $region51: #{tpu_custom_call.1} parent=47 // pred_region
          %s473 = sand.u32 %s161, 1
          %s474 = scalar_lea.sflag [#allocation3], %s473
          %s475 = sand.u32 %s161, 1
          %s476 = smul.addr %s475, 8
          %s477 = scalar_lea.vmem [#allocation2], %s476
          %478 = dma.done %s474, 128
        $region52: #{tpu_custom_call.1} parent=47 // pred_fallthru
          _
      $region48: #{tpu_custom_call.1} parent=5 // pred_fallthru
        _
    $region6: #{tpu_custom_call.1} parent=1 // loop_footer
      %s18 = sadd.s32 1, %s14
    $region7: #{tpu_custom_call.1} parent=1 // loop_footer_branch
      %13 = sbr.rel target = $region3
    $region8: #{tpu_custom_call.1} parent=1 // loop_exit
      _
    %479 = vsyncpa [#allocation3], 1
    %s480 = scalar_lea.sflag [#allocation3], 1
    %481 = vsyncpa %s480, 1

</llo_original>
